<compile_context>
chip_gen: v6e
topology: v6e:2x2x1
jax: 0.10.0
libtpu: 0.0.40
codegen_flags: <defaults>
</compile_context>

<pallas_src>
import jax
import jax.numpy as jnp
from jax.experimental import pallas as pl
from jax.experimental.pallas import tpu as pltpu

_LANES = 128
# 3 input slabs * 2048 rows * 128 lanes * 4 B * 2 buffers = 6 MiB of VMEM:
# comfortably inside the default scoped-VMEM limit on v5e/v6e and v7x (64 MiB).
_MAX_BLOCK_ROWS = 2048


def _round_up(x, m):
    return (x + m - 1) // m * m


def _mask_loss_kernel(x_ref, t_ref, v_ref, sum_ref, cnt_ref):
    # x/t/v tiles: (block_m, 128) in their HBM dtype; upcast for the math.
    x = x_ref[...].astype(jnp.float32)
    t = t_ref[...].astype(jnp.float32)
    valid = v_ref[...].astype(jnp.float32) > 0.5

    # numerically-stable BCE-with-logits (same formula torch uses):
    #   max(x, 0) - x*t + log(1 + exp(-|x|))
    bce = jnp.maximum(x, 0.0) - x * t + jnp.log1p(jnp.exp(-jnp.abs(x)))

    masked = jnp.where(valid, bce, 0.0)
    counts = jnp.where(valid, 1.0, 0.0)

    # Reduce to one vreg-shaped (8, 128) partial per block: the reshape groups
    # whole vregs (block_m is a multiple of 8), so this is pure VPU vreg adds;
    # the single cross-lane reduce happens in the JAX wrapper.
    bm = masked.shape[0]
    sum_ref[...] = jnp.sum(masked.reshape(bm // 8, 8, _LANES), axis=0)[None]
    cnt_ref[...] = jnp.sum(counts.reshape(bm // 8, 8, _LANES), axis=0)[None]


def pseudo_roi_mask_head_loss(mask_logits, labels, mask_targets, valid_masks,
                              *, max_block_rows=_MAX_BLOCK_ROWS):
    """Forward of PseudoROIMaskHead: returns the scalar mask loss.

    mask_logits: list of (Ni, C, R, R) arrays (as in the module) or a single
                 pre-stacked (N, C, R, R) array (avoids the concat copy).
    labels:      (N,) int class index per proposal.
    mask_targets, valid_masks: (N, R, R) already projected onto the proposals.
    """
    # glue: cat(mask_logits, dim=0) — skipped when the caller already stacked.
    if isinstance(mask_logits, (list, tuple)):
        mask_logits = (mask_logits[0] if len(mask_logits) == 1
                       else jnp.concatenate(mask_logits, axis=0))
    n, c, h, w = mask_logits.shape
    p = h * w

    # Per-proposal class gather done once here so the kernel never streams the
    # other C-1 class rows from HBM.
    lbl = labels.astype(jnp.int32)
    x = jnp.take_along_axis(mask_logits.reshape(n, c, p),
                            lbl[:, None, None], axis=1)[:, 0]      # (N, P)
    t = mask_targets.reshape(n, p)
    v = valid_masks.reshape(n, p)

    # Pad the flattened pixel axis to a lane multiple; padded pixels get
    # valid=0 so they are excluded from both the sum and the count.
    p_pad = _round_up(p, _LANES)
    if p_pad != p:
        pad = ((0, 0), (0, p_pad - p))
        x, t, v = jnp.pad(x, pad), jnp.pad(t, pad), jnp.pad(v, pad)

    # Fold pixels into lane-dense rows of 128: BCE is elementwise and the
    # reduction is global, so the grouping is irrelevant.
    m = n * (p_pad // _LANES)
    x = x.reshape(m, _LANES)
    t = t.reshape(m, _LANES)
    v = v.reshape(m, _LANES)

    block_m = min(max_block_rows, _round_up(m, 8))
    m_pad = _round_up(m, block_m)
    if m_pad != m:
        pad = ((0, m_pad - m), (0, 0))
        x, t, v = jnp.pad(x, pad), jnp.pad(t, pad), jnp.pad(v, pad)

    num_blocks = m_pad // block_m

    psum, pcnt = pl.pallas_call(
        _mask_loss_kernel,
        out_shape=(jax.ShapeDtypeStruct((num_blocks, 8, _LANES), jnp.float32),
                   jax.ShapeDtypeStruct((num_blocks, 8, _LANES), jnp.float32)),
        grid_spec=pltpu.PrefetchScalarGridSpec(
            num_scalar_prefetch=0,
            grid=(num_blocks,),
            in_specs=[
                pl.BlockSpec((block_m, _LANES), lambda i: (i, 0)),  # logits
                pl.BlockSpec((block_m, _LANES), lambda i: (i, 0)),  # targets
                pl.BlockSpec((block_m, _LANES), lambda i: (i, 0)),  # valid
            ],
            out_specs=[
                pl.BlockSpec((1, 8, _LANES), lambda i: (i, 0, 0)),
                pl.BlockSpec((1, 8, _LANES), lambda i: (i, 0, 0)),
            ],
        ),
        compiler_params=pltpu.CompilerParams(
            dimension_semantics=("parallel",)),  # both TCs on v7x split blocks
    )(x, t, v)

    total = jnp.sum(psum)
    count = jnp.sum(pcnt)
    # Guard the empty-valid-set case (torch would return NaN for an empty mean;
    # mask heads typically special-case it to 0).
    return jnp.where(count > 0, total / jnp.maximum(count, 1.0), 0.0)


def _reference_loss(mask_logits_list, labels, mask_targets, valid_masks):
    x = jnp.concatenate(mask_logits_list, axis=0)
    n = x.shape[0]
    x = x[jnp.arange(n), labels].astype(jnp.float32)        # (N, R, R)
    t = mask_targets.astype(jnp.float32)
    v = valid_masks > 0.5
    bce = jnp.maximum(x, 0.0) - x * t + jnp.log1p(jnp.exp(-jnp.abs(x)))
    return jnp.sum(jnp.where(v, bce, 0.0)) / jnp.sum(v.astype(jnp.float32))


if __name__ == "__main__":
    key = jax.random.PRNGKey(0)

    # --- case 1: shapes consistent with the module ---------------------------
    # 2 images x 4 proposals, 4 classes, mask resolution R=16
    num_images, props_per_image, num_classes, res = 2, 4, 4, 16
    n_total = num_images * props_per_image
    k1, k2, k3, k4, k5, key = jax.random.split(key, 6)
    mask_logits_list = [
        jax.random.normal(k1, (props_per_image, num_classes, res, res),
                          dtype=jnp.float32),
        jax.random.normal(k2, (props_per_image, num_classes, res, res),
                          dtype=jnp.float32),
    ]
    labels = jax.random.randint(k3, (n_total,), 0, num_classes)
    mask_targets = jax.random.uniform(k4, (n_total, res, res), dtype=jnp.float32)
    valid_masks = jax.random.uniform(k5, (n_total, res, res), dtype=jnp.float32)

    loss = jax.block_until_ready(
        pseudo_roi_mask_head_loss(mask_logits_list, labels,
                                  mask_targets, valid_masks))
    ref = jax.block_until_ready(
        _reference_loss(mask_logits_list, labels, mask_targets, valid_masks))
    assert jnp.allclose(loss, ref, rtol=1e-4, atol=1e-5), (loss, ref)

    # --- case 2: ragged / non-lane-aligned shapes + pre-stacked input ---------
    # 5 proposals, 3 classes, R=14 (P=196 -> padded), exercises padding path.
    n2, c2, r2 = 5, 3, 14
    k1, k2, k3, k4, key = jax.random.split(key, 5)
    logits2 = jax.random.normal(k1, (n2, c2, r2, r2), dtype=jnp.float32)
    labels2 = jax.random.randint(k2, (n2,), 0, c2)
    targets2 = jax.random.uniform(k3, (n2, r2, r2), dtype=jnp.float32)
    valid2 = jax.random.uniform(k4, (n2, r2, r2), dtype=jnp.float32)

    loss2 = jax.block_until_ready(
        pseudo_roi_mask_head_loss(logits2, labels2, targets2, valid2))
    ref2 = jax.block_until_ready(
        _reference_loss([logits2], labels2, targets2, valid2))
    assert jnp.allclose(loss2, ref2, rtol=1e-4, atol=1e-5), (loss2, ref2)

    print("KERNEL_OK")
</pallas_src>

<mosaic_0001>
module attributes {stable_mosaic.version = 11 : i64} {
  func.func @_mask_loss_kernel(%arg0: i32, %arg1: memref<16x128xf32, #tpu.memory_space<vmem>>, %arg2: memref<16x128xf32, #tpu.memory_space<vmem>>, %arg3: memref<16x128xf32, #tpu.memory_space<vmem>>, %arg4: memref<1x8x128xf32, #tpu.memory_space<vmem>>, %arg5: memref<1x8x128xf32, #tpu.memory_space<vmem>>) attributes {dimension_semantics = [#tpu.dimension_semantics<parallel>], iteration_bounds = array<i64: 1>, scalar_prefetch = 0 : i64, scratch_operands = 0 : i64, tpu.core_type = #tpu.core_type<tc>, window_params = [{transform_indices = @transform_0, window_bounds = array<i64: 16, 128>}, {transform_indices = @transform_1, window_bounds = array<i64: 16, 128>}, {transform_indices = @transform_2, window_bounds = array<i64: 16, 128>}, {transform_indices = @transform_3, window_bounds = array<i64: 1, 8, 128>}, {transform_indices = @transform_4, window_bounds = array<i64: 1, 8, 128>}]} {
    %c0 = arith.constant 0 : index
    %c0_0 = arith.constant 0 : index
    %0 = vector.load %arg1[%c0, %c0_0] : memref<16x128xf32, #tpu.memory_space<vmem>>, vector<16x128xf32>
    %c0_1 = arith.constant 0 : index
    %c0_2 = arith.constant 0 : index
    %1 = vector.load %arg2[%c0_1, %c0_2] : memref<16x128xf32, #tpu.memory_space<vmem>>, vector<16x128xf32>
    %c0_3 = arith.constant 0 : index
    %c0_4 = arith.constant 0 : index
    %2 = vector.load %arg3[%c0_3, %c0_4] : memref<16x128xf32, #tpu.memory_space<vmem>>, vector<16x128xf32>
    %cst = arith.constant 5.000000e-01 : f32
    %3 = vector.broadcast %cst : f32 to vector<16x128xf32>
    %4 = arith.cmpf ogt, %2, %3 : vector<16x128xf32>
    %cst_5 = arith.constant 0.000000e+00 : f32
    %5 = vector.broadcast %cst_5 : f32 to vector<16x128xf32>
    %6 = arith.maximumf %0, %5 : vector<16x128xf32>
    %7 = arith.mulf %0, %1 : vector<16x128xf32>
    %8 = arith.subf %6, %7 : vector<16x128xf32>
    %9 = math.absf %0 : vector<16x128xf32>
    %cst_6 = arith.constant 0.000000e+00 : f32
    %10 = vector.broadcast %cst_6 : f32 to vector<16x128xf32>
    %11 = arith.subf %10, %9 : vector<16x128xf32>
    %12 = math.exp %11 : vector<16x128xf32>
    %13 = math.log1p %12 : vector<16x128xf32>
    %14 = arith.addf %8, %13 : vector<16x128xf32>
    %cst_7 = arith.constant 0.000000e+00 : f32
    %15 = vector.broadcast %cst_7 : f32 to vector<16x128xf32>
    %16 = arith.select %4, %14, %15 : vector<16x128xi1>, vector<16x128xf32>
    %cst_8 = arith.constant 1.000000e+00 : f32
    %cst_9 = arith.constant 0.000000e+00 : f32
    %17 = vector.broadcast %cst_8 : f32 to vector<16x128xf32>
    %18 = vector.broadcast %cst_9 : f32 to vector<16x128xf32>
    %19 = arith.select %4, %17, %18 : vector<16x128xi1>, vector<16x128xf32>
    %20 = vector.shape_cast %16 : vector<16x128xf32> to vector<2x8x128xf32>
    %cst_10 = arith.constant dense<0.000000e+00> : vector<8x128xf32>
    %21 = vector.multi_reduction <add>, %20, %cst_10 [0] : vector<2x8x128xf32> to vector<8x128xf32>
    %22 = vector.shape_cast %21 : vector<8x128xf32> to vector<1x8x128xf32>
    %c0_11 = arith.constant 0 : index
    %c0_12 = arith.constant 0 : index
    %c0_13 = arith.constant 0 : index
    %23 = vector.load %arg4[%c0_11, %c0_12, %c0_13] : memref<1x8x128xf32, #tpu.memory_space<vmem>>, vector<1x8x128xf32>
    tpu.vector_store %arg4[%c0_11, %c0_12, %c0_13], %22 {strides = array<i32>} : memref<1x8x128xf32, #tpu.memory_space<vmem>>, vector<1x8x128xf32>,
    %24 = vector.shape_cast %19 : vector<16x128xf32> to vector<2x8x128xf32>
    %cst_14 = arith.constant dense<0.000000e+00> : vector<8x128xf32>
    %25 = vector.multi_reduction <add>, %24, %cst_14 [0] : vector<2x8x128xf32> to vector<8x128xf32>
    %26 = vector.shape_cast %25 : vector<8x128xf32> to vector<1x8x128xf32>
    %c0_15 = arith.constant 0 : index
    %c0_16 = arith.constant 0 : index
    %c0_17 = arith.constant 0 : index
    %27 = vector.load %arg5[%c0_15, %c0_16, %c0_17] : memref<1x8x128xf32, #tpu.memory_space<vmem>>, vector<1x8x128xf32>
    tpu.vector_store %arg5[%c0_15, %c0_16, %c0_17], %26 {strides = array<i32>} : memref<1x8x128xf32, #tpu.memory_space<vmem>>, vector<1x8x128xf32>,
    return
  }
  func.func @transform_0(%arg0: i32) -> (i32, i32) {
    %c0_i32 = arith.constant 0 : i32
    %c0_i32_0 = arith.constant 0 : i32
    return %arg0, %c0_i32 : i32, i32
  }
  func.func @transform_1(%arg0: i32) -> (i32, i32) {
    %c0_i32 = arith.constant 0 : i32
    %c0_i32_0 = arith.constant 0 : i32
    return %arg0, %c0_i32 : i32, i32
  }
  func.func @transform_2(%arg0: i32) -> (i32, i32) {
    %c0_i32 = arith.constant 0 : i32
    %c0_i32_0 = arith.constant 0 : i32
    return %arg0, %c0_i32 : i32, i32
  }
  func.func @transform_3(%arg0: i32) -> (i32, i32, i32) {
    %c0_i32 = arith.constant 0 : i32
    %c0_i32_0 = arith.constant 0 : i32
    %c0_i32_1 = arith.constant 0 : i32
    return %arg0, %c0_i32, %c0_i32_0 : i32, i32, i32
  }
  func.func @transform_4(%arg0: i32) -> (i32, i32, i32) {
    %c0_i32 = arith.constant 0 : i32
    %c0_i32_0 = arith.constant 0 : i32
    %c0_i32_1 = arith.constant 0 : i32
    return %arg0, %c0_i32, %c0_i32_0 : i32, i32, i32
  }
}

</mosaic_0001>

<llo_original>
// kernel: tpu_custom_call.1
$region0: #{tpu_custom_call.1}
  #allocation0 [shape = 'u32[]', space=smem, size = 0x4, offset = 0x4, fixed_abs, tag = 'smem constant byte address 0x4 - core index']
  #allocation1 [shape = 'u32[144,128]{1,0:T(1,128)}', space=vmem, size = 0x12000, scoped, tag = 'internal scratch']
  %s0 = inlined_call_operand.hbm [shape: f32[16,128], index: 0, kind: input, shape index: {}]
  %s1 = inlined_call_operand.hbm [shape: f32[16,128], index: 1, kind: input, shape index: {}]
  %s2 = inlined_call_operand.hbm [shape: f32[16,128], index: 2, kind: input, shape index: {}]
  %s3 = inlined_call_operand.hbm [shape: f32[1,8,128], index: 3, kind: output, shape index: {0}]
  %s4 = inlined_call_operand.hbm [shape: f32[1,8,128], index: 4, kind: output, shape index: {1}]
  %5 = xla_tuple %s3, %s4
  %s6 = sld [smem:[#allocation0]]
  $region42: #{tpu_custom_call.1} parent=0
    _
  %s8 = ssub.s32 1, %s6
  %s9 = scalar_select 0, %s8, %s6
  $region1: #{tpu_custom_call.1} parent=0
    #allocation2 [shape = 'u8[8192]{0}', space=vmem, size = 0x2000, scoped, tag = 'input window, operand 0, single buffered']
    #allocation3 [shape = 's32[1]{0}', space=sflag, size = 0x4, scoped, tag = 'scoped memory for tpu_custom_call.1']
    #allocation4 [shape = 's32[1]{0}', space=sflag, size = 0x4, scoped, tag = 'scoped memory for tpu_custom_call.1']
    #allocation5 [shape = 'u8[8192]{0}', space=vmem, size = 0x2000, scoped, tag = 'input window, operand 1, single buffered']
    #allocation6 [shape = 's32[1]{0}', space=sflag, size = 0x4, scoped, tag = 'scoped memory for tpu_custom_call.1']
    #allocation7 [shape = 'u8[8192]{0}', space=vmem, size = 0x2000, scoped, tag = 'input window, operand 2, single buffered']
    #allocation8 [shape = 'u8[4096]{0}', space=vmem, size = 0x1000, scoped, tag = 'output window, operand 0, single buffered']
    #allocation9 [shape = 'u8[4096]{0}', space=vmem, size = 0x1000, scoped, tag = 'output window, operand 1, single buffered']
    #allocation10 [shape = 's32[1]{0}', space=sflag, size = 0x4, scoped, tag = 'scoped memory for tpu_custom_call.1']
    %10 = vsyncpa [#allocation3], 0
    %11 = vsyncpa [#allocation6], 0
    %12 = vsyncpa [#allocation4], 0
    %13 = vsyncpa [#allocation10], 0
    // Predicated region
    $region2: #{tpu_custom_call.1} parent=1 // pred_check
      _
    $region3: #{tpu_custom_call.1} parent=1 // pred_check_branch
      %15 = sbr.rel (0) target = $region5
    $region4: #{tpu_custom_call.1} parent=1 // pred_region
      %s17 = ssub.s32 256, 256
      %18 = vsyncadd [#allocation3], %s17
      %s19 = sshll.u32 [#allocation2], 4
      %s20 = int_to_ptr.vmem [resolvable:$true] %s19
      %25 = dma.hbm_to_vmem [thread:$0]  %s0, 256, %s20, [#allocation3], 128, 128, 8
    $region5: #{tpu_custom_call.1} parent=1 // pred_fallthru
      _
    // Predicated region
    $region6: #{tpu_custom_call.1} parent=1 // pred_check
      _
    $region7: #{tpu_custom_call.1} parent=1 // pred_check_branch
      %27 = sbr.rel (0) target = $region9
    $region8: #{tpu_custom_call.1} parent=1 // pred_region
      %s29 = ssub.s32 256, 256
      %30 = vsyncadd [#allocation6], %s29
      %s31 = sshll.u32 [#allocation5], 4
      %s32 = int_to_ptr.vmem [resolvable:$true] %s31
      %37 = dma.hbm_to_vmem [thread:$0]  %s1, 256, %s32, [#allocation6], 128, 128, 8
    $region9: #{tpu_custom_call.1} parent=1 // pred_fallthru
      _
    // Predicated region
    $region10: #{tpu_custom_call.1} parent=1 // pred_check
      _
    $region11: #{tpu_custom_call.1} parent=1 // pred_check_branch
      %39 = sbr.rel (0) target = $region13
    $region12: #{tpu_custom_call.1} parent=1 // pred_region
      %s41 = ssub.s32 256, 256
      %42 = vsyncadd [#allocation6], %s41
      %s43 = sshll.u32 [#allocation7], 4
      %s44 = int_to_ptr.vmem [resolvable:$true] %s43
      %49 = dma.hbm_to_vmem [thread:$0]  %s2, 256, %s44, [#allocation6], 128, 128, 8
    $region13: #{tpu_custom_call.1} parent=1 // pred_fallthru
      _
    // Predicated region
    $region14: #{tpu_custom_call.1} parent=1 // pred_check
      _
    $region15: #{tpu_custom_call.1} parent=1 // pred_check_branch
      %51 = sbr.rel (0) target = $region17
    $region16: #{tpu_custom_call.1} parent=1 // pred_region
      %52 = dma.done [#allocation3], 256
    $region17: #{tpu_custom_call.1} parent=1 // pred_fallthru
      _
    // Predicated region
    $region18: #{tpu_custom_call.1} parent=1 // pred_check
      _
    $region19: #{tpu_custom_call.1} parent=1 // pred_check_branch
      %54 = sbr.rel (0) target = $region21
    $region20: #{tpu_custom_call.1} parent=1 // pred_region
      %55 = dma.done [#allocation6], 256
    $region21: #{tpu_custom_call.1} parent=1 // pred_fallthru
      _
    // Predicated region
    $region22: #{tpu_custom_call.1} parent=1 // pred_check
      _
    $region23: #{tpu_custom_call.1} parent=1 // pred_check_branch
      %57 = sbr.rel (0) target = $region25
    $region24: #{tpu_custom_call.1} parent=1 // pred_region
      %58 = dma.done [#allocation6], 256
    $region25: #{tpu_custom_call.1} parent=1 // pred_fallthru
      _
    %v59 = vld [vmem:[#allocation2] sm:$0xff]
    %v60 = vld [vmem:[#allocation2 + $0x8] sm:$0xff]
    %v61 = vld [vmem:[#allocation5] sm:$0xff]
    %v62 = vld [vmem:[#allocation5 + $0x8] sm:$0xff]
    %v63 = vld [vmem:[#allocation7] sm:$0xff]
    %v64 = vld [vmem:[#allocation7 + $0x8] sm:$0xff]
    %vm65 = vcmp.gt.f32.partialorder %v63, 0.5
    %vm66 = vcmp.gt.f32.partialorder %v64, 0.5
    %v67 = vmax.f32 %v59, 0.0
    %v68 = vmax.f32 %v60, 0.0
    %v69 = vmul.f32 %v59, %v61
    %v70 = vmul.f32 %v60, %v62
    %v71 = vsub.f32 %v67, %v69
    %v72 = vsub.f32 %v68, %v70
    %v73 = vand.u32 2147483647, %v59
    %v74 = vand.u32 2147483647, %v60
    %v75 = vsub.f32 0.0, %v73
    %v76 = vsub.f32 0.0, %v74
    %v77 = vmul.f32 %v75, 1.442695
    %v78 = vpow.pop %v77
    %v79 = vmul.f32 %v76, 1.442695
    %v80 = vpow.pop %v79
    %v81 = vadd.f32 %v78, 1.0
    %v82 = vlog2.pop %v81
    %v83 = vmul.f32 %v82, 0.6931472
    %v84 = vmul.f32 -0.5, %v78
    %v85 = vadd.f32 %v84, 1.0
    %v86 = vmul.f32 %v85, %v78
    %v87 = vand.u32 2147483647, %v78
    %vm88 = vcmp.lt.f32.partialorder %v87, 0.0004427343
    %v89 = vsel %vm88, %v86, %v83
    %v90 = vadd.f32 %v80, 1.0
    %v91 = vlog2.pop %v90
    %v92 = vmul.f32 %v91, 0.6931472
    %v93 = vmul.f32 -0.5, %v80
    %v94 = vadd.f32 %v93, 1.0
    %v95 = vmul.f32 %v94, %v80
    %v96 = vand.u32 2147483647, %v80
    %vm97 = vcmp.lt.f32.partialorder %v96, 0.0004427343
    %v98 = vsel %vm97, %v95, %v92
    %v99 = vadd.f32 %v71, %v89
    %v100 = vadd.f32 %v72, %v98
    %v101 = vsel %vm65, %v99, 0.0
    %v102 = vsel %vm66, %v100, 0.0
    %v103 = vsel %vm65, 1.0, 0.0
    %v104 = vsel %vm66, 1.0, 0.0
    %v105 = vadd.f32 %v101, %v102
    %106 = vst [vmem:[#allocation8] sm:$0xff] %v105
    %v107 = vadd.f32 %v103, %v104
    %108 = vst [vmem:[#allocation9] sm:$0xff] %v107
    // Predicated region
    $region26: #{tpu_custom_call.1} parent=1 // pred_check
      _
    $region27: #{tpu_custom_call.1} parent=1 // pred_check_branch
      %110 = sbr.rel (0) target = $region29
    $region28: #{tpu_custom_call.1} parent=1 // pred_region
      %s112 = ssub.s32 128, 128
      %113 = vsyncadd [#allocation4], %s112
      %s115 = sshll.u32 [#allocation8], 4
      %s116 = int_to_ptr.vmem [resolvable:$true] %s115
      %118 = dma.vmem_to_hbm [thread:$0]  %s116, 128, %s3, [#allocation4]
    $region29: #{tpu_custom_call.1} parent=1 // pred_fallthru
      _
    // Predicated region
    $region30: #{tpu_custom_call.1} parent=1 // pred_check
      _
    $region31: #{tpu_custom_call.1} parent=1 // pred_check_branch
      %120 = sbr.rel (0) target = $region33
    $region32: #{tpu_custom_call.1} parent=1 // pred_region
      %s122 = ssub.s32 128, 128
      %123 = vsyncadd [#allocation10], %s122
      %s125 = sshll.u32 [#allocation9], 4
      %s126 = int_to_ptr.vmem [resolvable:$true] %s125
      %128 = dma.vmem_to_hbm [thread:$0]  %s126, 128, %s4, [#allocation10]
    $region33: #{tpu_custom_call.1} parent=1 // pred_fallthru
      _
    // Predicated region
    $region34: #{tpu_custom_call.1} parent=1 // pred_check
      _
    $region35: #{tpu_custom_call.1} parent=1 // pred_check_branch
      %130 = sbr.rel (0) target = $region37
    $region36: #{tpu_custom_call.1} parent=1 // pred_region
      %131 = dma.done [#allocation4], 128
    $region37: #{tpu_custom_call.1} parent=1 // pred_fallthru
      _
    // Predicated region
    $region38: #{tpu_custom_call.1} parent=1 // pred_check
      _
    $region39: #{tpu_custom_call.1} parent=1 // pred_check_branch
      %133 = sbr.rel (0) target = $region41
    $region40: #{tpu_custom_call.1} parent=1 // pred_region
      %134 = dma.done [#allocation10], 128
    $region41: #{tpu_custom_call.1} parent=1 // pred_fallthru
      _
    %135 = vsyncpa [#allocation3], 1
    %136 = vsyncpa [#allocation6], 1
    %137 = vsyncpa [#allocation4], 1
    %138 = vsyncpa [#allocation10], 1

</llo_original>
